<compile_context>
chip_gen: v5e
topology: v5e:2x2
jax: 0.10.0
libtpu: 0.0.40
codegen_flags: <defaults>
</compile_context>

<pallas_src>
import jax
import jax.numpy as jnp
from jax import lax
from jax.experimental import pallas as pl
from jax.experimental.pallas import tpu as pltpu


def _round_up(x, m):
    return ((x + m - 1) // m) * m


def _itemsize(dt):
    return jax.dtypes.canonicalize_dtype(dt).itemsize


def _vmem_capacity_bytes():
    """Physical VMEM of the current generation; conservative fallback = v7x (64 MiB)."""
    try:
        return max(int(pltpu.get_tpu_info().vmem_capacity_bytes), 16 << 20)
    except Exception:
        return 64 << 20


def _plan_tiles(M, D, mm_bytes, out_bytes, budget, tm=None, tn=None, tk=None):
    """Pick (tm, tk, tn, Kp, Np, vmem_need) that fits `budget` bytes of VMEM."""
    LANE = 128

    # N (output features): lane-dense.  When N must be tiled, use 512-wide
    # tiles (multiple of the 256-wide v6e/v7x MXU; also fine on v5e's 128).
    if tn is None:
        Np0 = _round_up(D, LANE)
        if Np0 <= 1536:
            tn, Np = Np0, Np0
        else:
            tn = 512
            Np = _round_up(D, tn)
    else:
        Np = _round_up(D, tn)

    # K (input features): keep the full-K weight column resident when it fits
    # comfortably (then x needs NO padding along D); otherwise tile K.
    if tk is None:
        if D * tn * mm_bytes <= budget // 3:
            tk, Kp = D, D
        else:
            tk = 512
            Kp = _round_up(D, tk)
    else:
        Kp = _round_up(D, tk)

    # M (rows): as large as fits.  Small feature dims -> memory-bound regime ->
    # large row tiles amortise the ~0.35us/step pipeline overhead.
    if tm is None:
        tm_cap = 1024 if max(Kp, Np) <= 512 else 256
        tm = min(_round_up(M, 8), tm_cap)
        # v7x megacore: keep at least 2 "parallel" row steps for non-tiny M.
        if M > 256 and pl.cdiv(M, tm) == 1:
            tm = _round_up(pl.cdiv(M, 2), 8)
    else:
        tm = _round_up(tm, 8)

    def need(tm_):
        return (2 * tm_ * tk * mm_bytes       # x tile, double buffered
                + 2 * tk * tn * mm_bytes      # weight tile (2 bufs = conservative)
                + 2 * tn * 4                  # bias
                + 2 * tm_ * tn * out_bytes    # out tile, double buffered
                + tm_ * tn * 4)               # f32 accumulator scratch

    while tm > 8 and need(tm) > budget:
        tm = max(8, _round_up(tm // 2, 8))
    return tm, tk, tn, Kp, Np, need(tm)


def lin_kernel(x_ref, w_ref, b_ref, o_ref, acc_ref):
    """Computes one (tm, tn) output tile; K reduction over grid axis 2 ('arbitrary')."""
    @pl.when(pl.program_id(2) == 0)
    def _init():
        acc_ref[...] = jnp.zeros_like(acc_ref)

    # Plain rhs-dim-0 contraction: W was transposed once in the wrapper, so the
    # MXU consumes it directly (no per-step transpose / relayout).
    acc_ref[...] += jnp.dot(x_ref[...], w_ref[...],
                            preferred_element_type=jnp.float32)

    @pl.when(pl.program_id(2) == pl.num_programs(2) - 1)
    def _finalize():
        o_ref[...] = (acc_ref[...] + b_ref[...]).astype(o_ref.dtype)


def lin_forward(x, w, b, *, mm_dtype=jnp.bfloat16, tm=None, tn=None, tk=None):
    """x: (..., D); w: (D, D) nn.Linear weight (out, in); b: (D,)."""
    orig_shape = x.shape
    D = orig_shape[-1]
    M = x.size // D
    out_dtype = x.dtype

    mm_bytes = _itemsize(mm_dtype)
    out_bytes = _itemsize(out_dtype)

    cap = _vmem_capacity_bytes()
    budget = int(0.7 * cap)
    tm, tk, tn, Kp, Np, need = _plan_tiles(M, D, mm_bytes, out_bytes, budget,
                                           tm=tm, tn=tn, tk=tk)
    grid_m = pl.cdiv(M, tm)       # ragged last row block handled by Pallas masking
    grid_n = Np // tn
    grid_k = Kp // tk

    # ---- one-time operand prep in the wrapper (amortised over all tiles) ----
    x2 = x.reshape(M, D)
    if Kp != D:                   # only when K is tiled (large D)
        x2 = jnp.pad(x2, ((0, 0), (0, Kp - D)))
    x_mm = x2.astype(mm_dtype)

    wt = jnp.transpose(w)         # (in, out): kernel contracts rhs dim 0
    if Kp != D or Np != D:
        wt = jnp.pad(wt, ((0, Kp - D), (0, Np - D)))
    w_mm = wt.astype(mm_dtype)

    b2 = b.astype(jnp.float32)
    if Np != D:
        b2 = jnp.pad(b2, (0, Np - D))
    b2 = b2.reshape(1, Np)

    vmem_limit = int(min(max(2 * need + (4 << 20), 32 << 20), int(0.85 * cap)))

    cost = pl.CostEstimate(
        flops=2 * M * Kp * Np,
        transcendentals=0,
        bytes_accessed=(M * Kp * mm_bytes + Kp * Np * mm_bytes
                        + Np * 4 + M * Np * out_bytes),
    )

    w_is_const = (grid_n == 1 and grid_k == 1)   # resident weight, block index fixed
    b_is_const = (grid_n == 1)

    def build(single_buffer_consts):
        def const_spec(shape, imap, is_const):
            if is_const and single_buffer_consts:
                # Grid-constant block: a single VMEM buffer is enough.
                return pl.BlockSpec(shape, imap, pipeline_mode=pl.Buffered(1))
            return pl.BlockSpec(shape, imap)

        return pl.pallas_call(
            lin_kernel,
            out_shape=jax.ShapeDtypeStruct((M, Np), out_dtype),
            grid_spec=pltpu.PrefetchScalarGridSpec(
                num_scalar_prefetch=0,
                grid=(grid_m, grid_n, grid_k),
                in_specs=[
                    pl.BlockSpec((tm, tk), lambda i, n, k: (i, k)),           # x
                    const_spec((tk, tn), lambda i, n, k: (k, n), w_is_const),  # W^T
                    const_spec((1, tn), lambda i, n, k: (0, n), b_is_const),   # bias
                ],
                out_specs=pl.BlockSpec((tm, tn), lambda i, n, k: (i, n)),
                scratch_shapes=[pltpu.VMEM((tm, tn), jnp.float32)],
            ),
            compiler_params=pltpu.CompilerParams(
                dimension_semantics=("parallel", "parallel", "arbitrary"),
                vmem_limit_bytes=vmem_limit,
            ),
            cost_estimate=cost,
        )

    try:
        out = build(True)(x_mm, w_mm, b2)
    except Exception:
        # pl.Buffered(1) is a VMEM-only optimisation; fall back to default
        # double buffering if this jax/libtpu build rejects buffer_count=1.
        out = build(False)(x_mm, w_mm, b2)

    if Np != D:
        out = out[:, :D]
    return out.reshape(orig_shape)


def _ref_linear_bf16(x, w, b):
    """Reference with the same bf16-operand / f32-accumulate numerics as the kernel."""
    D = x.shape[-1]
    y = lax.dot_general(
        x.reshape(-1, D).astype(jnp.bfloat16),
        w.astype(jnp.bfloat16),
        dimension_numbers=(((1,), (1,)), ((), ())),   # x @ W^T
        preferred_element_type=jnp.float32,
    )
    return (y + b.astype(jnp.float32)).reshape(x.shape[:-1] + (w.shape[0],))


if __name__ == "__main__":
    key = jax.random.PRNGKey(0)
    B, S, D = 2, 8, 32   # inp_dim = 32
    kx, kb, kw, kx2, kw2 = jax.random.split(key, 5)

    x = jax.random.normal(kx, (B, S, D), dtype=jnp.float32)

    # Module-faithful parameters: weight is copied from identity in __init__;
    # bias keeps nn.Linear's default uniform(-1/sqrt(D), 1/sqrt(D)) init.
    w_eye = jnp.eye(D, dtype=jnp.float32)
    bound = 1.0 / (D ** 0.5)
    b = jax.random.uniform(kb, (D,), dtype=jnp.float32, minval=-bound, maxval=bound)

    # 1) Identity weight (module-faithful): bf16 matmul with identity is exact
    #    on bf16(x), so this comparison is tight.
    y = jax.block_until_ready(lin_forward(x, w_eye, b))
    assert y.shape == (B, S, D)
    y_ref = x.astype(jnp.bfloat16).astype(jnp.float32) + b
    assert jnp.allclose(y, y_ref, atol=1e-5, rtol=1e-5), "mismatch (identity W)"

    # 2) Random, non-symmetric W so a W-vs-W^T bug would be caught.
    w_rand = jax.random.normal(kw, (D, D), dtype=jnp.float32)
    y2 = jax.block_until_ready(lin_forward(x, w_rand, b))
    assert jnp.allclose(y2, _ref_linear_bf16(x, w_rand, b), atol=2e-2, rtol=2e-2), \
        "mismatch (random W)"

    # 3) Exercise the tiled M / N / K accumulator path (grid = 2 x 2 x 2) on a
    #    slightly larger feature dim with explicit small tiles.
    D3 = 256
    x3 = jax.random.normal(kx2, (B, S, D3), dtype=jnp.float32)
    w3 = jax.random.normal(kw2, (D3, D3), dtype=jnp.float32)
    b3 = jax.random.uniform(kb, (D3,), dtype=jnp.float32, minval=-0.1, maxval=0.1)
    y3 = jax.block_until_ready(lin_forward(x3, w3, b3, tm=8, tn=128, tk=128))
    assert jnp.allclose(y3, _ref_linear_bf16(x3, w3, b3), atol=1e-2, rtol=1e-2), \
        "mismatch (tiled K/N path)"

    print("KERNEL_OK")
</pallas_src>

<mosaic_0001>
module attributes {stable_mosaic.version = 11 : i64} {
  func.func @lin_kernel(%arg0: i32, %arg1: i32, %arg2: i32, %arg3: memref<16x32xbf16, #tpu.memory_space<vmem>>, %arg4: memref<32x128xbf16, #tpu.memory_space<vmem>>, %arg5: memref<1x128xf32, #tpu.memory_space<vmem>>, %arg6: memref<16x128xf32, #tpu.memory_space<vmem>>, %arg7: memref<16x128xf32, #tpu.memory_space<vmem>>) attributes {dimension_semantics = [#tpu.dimension_semantics<parallel>, #tpu.dimension_semantics<parallel>, #tpu.dimension_semantics<arbitrary>], iteration_bounds = array<i64: 1, 1, 1>, scalar_prefetch = 0 : i64, scratch_operands = 1 : i64, tpu.core_type = #tpu.core_type<tc>, window_params = [{transform_indices = @transform_0, window_bounds = array<i64: 16, 32>}, {pipeline_mode = #tpu.pipeline_mode<synchronous>, transform_indices = @transform_1, window_bounds = array<i64: 32, 128>}, {pipeline_mode = #tpu.pipeline_mode<synchronous>, transform_indices = @transform_2, window_bounds = array<i64: 1, 128>}, {transform_indices = @transform_3, window_bounds = array<i64: 16, 128>}]} {
    %c0_i32 = arith.constant 0 : i32
    %0 = arith.cmpi eq, %arg2, %c0_i32 : i32
    %1 = arith.extui %0 : i1 to i32
    %c0_i32_0 = arith.constant 0 : i32
    %2 = arith.cmpi ne, %1, %c0_i32_0 : i32
    scf.if %2 {
      %cst_10 = arith.constant 0.000000e+00 : f32
      %12 = vector.broadcast %cst_10 : f32 to vector<16x128xf32>
      %c0_11 = arith.constant 0 : index
      %c0_12 = arith.constant 0 : index
      %13 = vector.load %arg7[%c0_11, %c0_12] : memref<16x128xf32, #tpu.memory_space<vmem>>, vector<16x128xf32>
      tpu.vector_store %arg7[%c0_11, %c0_12], %12 {strides = array<i32>} : memref<16x128xf32, #tpu.memory_space<vmem>>, vector<16x128xf32>,
    } else {
    }
    %c0 = arith.constant 0 : index
    %c0_1 = arith.constant 0 : index
    %3 = vector.load %arg7[%c0, %c0_1] : memref<16x128xf32, #tpu.memory_space<vmem>>, vector<16x128xf32>
    %c0_2 = arith.constant 0 : index
    %c0_3 = arith.constant 0 : index
    %4 = vector.load %arg3[%c0_2, %c0_3] : memref<16x32xbf16, #tpu.memory_space<vmem>>, vector<16x32xbf16>
    %c0_4 = arith.constant 0 : index
    %c0_5 = arith.constant 0 : index
    %5 = vector.load %arg4[%c0_4, %c0_5] : memref<32x128xbf16, #tpu.memory_space<vmem>>, vector<32x128xbf16>
    %cst = arith.constant dense<0.000000e+00> : vector<16x128xf32>
    %6 = tpu.matmul %4, %5, %cst {dimension_numbers = #tpu.dot_dimension_numbers<[1], [0], [0], [1], [0, 0, 1, 1], [], []>} : vector<16x32xbf16>, vector<32x128xbf16>, vector<16x128xf32> -> vector<16x128xf32>
    %7 = arith.addf %3, %6 : vector<16x128xf32>
    %c0_6 = arith.constant 0 : index
    %c0_7 = arith.constant 0 : index
    %8 = vector.load %arg7[%c0_6, %c0_7] : memref<16x128xf32, #tpu.memory_space<vmem>>, vector<16x128xf32>
    tpu.vector_store %arg7[%c0_6, %c0_7], %7 {strides = array<i32>} : memref<16x128xf32, #tpu.memory_space<vmem>>, vector<16x128xf32>,
    %c0_i32_8 = arith.constant 0 : i32
    %9 = arith.cmpi eq, %arg2, %c0_i32_8 : i32
    %10 = arith.extui %9 : i1 to i32
    %c0_i32_9 = arith.constant 0 : i32
    %11 = arith.cmpi ne, %10, %c0_i32_9 : i32
    scf.if %11 {
      %c0_10 = arith.constant 0 : index
      %c0_11 = arith.constant 0 : index
      %12 = vector.load %arg7[%c0_10, %c0_11] : memref<16x128xf32, #tpu.memory_space<vmem>>, vector<16x128xf32>
      %c0_12 = arith.constant 0 : index
      %c0_13 = arith.constant 0 : index
      %13 = vector.load %arg5[%c0_12, %c0_13] : memref<1x128xf32, #tpu.memory_space<vmem>>, vector<1x128xf32>
      %14 = vector.broadcast %13 : vector<1x128xf32> to vector<16x128xf32>
      %15 = arith.addf %12, %14 : vector<16x128xf32>
      %c0_14 = arith.constant 0 : index
      %c0_15 = arith.constant 0 : index
      %16 = vector.load %arg6[%c0_14, %c0_15] : memref<16x128xf32, #tpu.memory_space<vmem>>, vector<16x128xf32>
      tpu.vector_store %arg6[%c0_14, %c0_15], %15 {strides = array<i32>} : memref<16x128xf32, #tpu.memory_space<vmem>>, vector<16x128xf32>,
    } else {
    }
    return
  }
  func.func @transform_0(%arg0: i32, %arg1: i32, %arg2: i32) -> (i32, i32) {
    %c0_i32 = arith.constant 0 : i32
    return %arg0, %arg2 : i32, i32
  }
  func.func @transform_1(%arg0: i32, %arg1: i32, %arg2: i32) -> (i32, i32) {
    %c0_i32 = arith.constant 0 : i32
    return %arg2, %arg1 : i32, i32
  }
  func.func @transform_2(%arg0: i32, %arg1: i32, %arg2: i32) -> (i32, i32) {
    %c0_i32 = arith.constant 0 : i32
    %c0_i32_0 = arith.constant 0 : i32
    return %c0_i32, %arg1 : i32, i32
  }
  func.func @transform_3(%arg0: i32, %arg1: i32, %arg2: i32) -> (i32, i32) {
    %c0_i32 = arith.constant 0 : i32
    return %arg0, %arg1 : i32, i32
  }
}

module attributes {stable_mosaic.version = 11 : i64} {
  func.func @lin_kernel(%arg0: i32, %arg1: i32, %arg2: i32, %arg3: memref<16x32xbf16, #tpu.memory_space<vmem>>, %arg4: memref<32x128xbf16, #tpu.memory_space<vmem>>, %arg5: memref<1x128xf32, #tpu.memory_space<vmem>>, %arg6: memref<16x128xf32, #tpu.memory_space<vmem>>, %arg7: memref<16x128xf32, #tpu.memory_space<vmem>>) attributes {dimension_semantics = [#tpu.dimension_semantics<parallel>, #tpu.dimension_semantics<parallel>, #tpu.dimension_semantics<arbitrary>], iteration_bounds = array<i64: 1, 1, 1>, scalar_prefetch = 0 : i64, scratch_operands = 1 : i64, tpu.core_type = #tpu.core_type<tc>, window_params = [{transform_indices = @transform_0, window_bounds = array<i64: 16, 32>}, {transform_indices = @transform_1, window_bounds = array<i64: 32, 128>}, {transform_indices = @transform_2, window_bounds = array<i64: 1, 128>}, {transform_indices = @transform_3, window_bounds = array<i64: 16, 128>}]} {
    %c0_i32 = arith.constant 0 : i32
    %0 = arith.cmpi eq, %arg2, %c0_i32 : i32
    %1 = arith.extui %0 : i1 to i32
    %c0_i32_0 = arith.constant 0 : i32
    %2 = arith.cmpi ne, %1, %c0_i32_0 : i32
    scf.if %2 {
      %cst_10 = arith.constant 0.000000e+00 : f32
      %12 = vector.broadcast %cst_10 : f32 to vector<16x128xf32>
      %c0_11 = arith.constant 0 : index
      %c0_12 = arith.constant 0 : index
      %13 = vector.load %arg7[%c0_11, %c0_12] : memref<16x128xf32, #tpu.memory_space<vmem>>, vector<16x128xf32>
      tpu.vector_store %arg7[%c0_11, %c0_12], %12 {strides = array<i32>} : memref<16x128xf32, #tpu.memory_space<vmem>>, vector<16x128xf32>,
    } else {
    }
    %c0 = arith.constant 0 : index
    %c0_1 = arith.constant 0 : index
    %3 = vector.load %arg7[%c0, %c0_1] : memref<16x128xf32, #tpu.memory_space<vmem>>, vector<16x128xf32>
    %c0_2 = arith.constant 0 : index
    %c0_3 = arith.constant 0 : index
    %4 = vector.load %arg3[%c0_2, %c0_3] : memref<16x32xbf16, #tpu.memory_space<vmem>>, vector<16x32xbf16>
    %c0_4 = arith.constant 0 : index
    %c0_5 = arith.constant 0 : index
    %5 = vector.load %arg4[%c0_4, %c0_5] : memref<32x128xbf16, #tpu.memory_space<vmem>>, vector<32x128xbf16>
    %cst = arith.constant dense<0.000000e+00> : vector<16x128xf32>
    %6 = tpu.matmul %4, %5, %cst {dimension_numbers = #tpu.dot_dimension_numbers<[1], [0], [0], [1], [0, 0, 1, 1], [], []>} : vector<16x32xbf16>, vector<32x128xbf16>, vector<16x128xf32> -> vector<16x128xf32>
    %7 = arith.addf %3, %6 : vector<16x128xf32>
    %c0_6 = arith.constant 0 : index
    %c0_7 = arith.constant 0 : index
    %8 = vector.load %arg7[%c0_6, %c0_7] : memref<16x128xf32, #tpu.memory_space<vmem>>, vector<16x128xf32>
    tpu.vector_store %arg7[%c0_6, %c0_7], %7 {strides = array<i32>} : memref<16x128xf32, #tpu.memory_space<vmem>>, vector<16x128xf32>,
    %c0_i32_8 = arith.constant 0 : i32
    %9 = arith.cmpi eq, %arg2, %c0_i32_8 : i32
    %10 = arith.extui %9 : i1 to i32
    %c0_i32_9 = arith.constant 0 : i32
    %11 = arith.cmpi ne, %10, %c0_i32_9 : i32
    scf.if %11 {
      %c0_10 = arith.constant 0 : index
      %c0_11 = arith.constant 0 : index
      %12 = vector.load %arg7[%c0_10, %c0_11] : memref<16x128xf32, #tpu.memory_space<vmem>>, vector<16x128xf32>
      %c0_12 = arith.constant 0 : index
      %c0_13 = arith.constant 0 : index
      %13 = vector.load %arg5[%c0_12, %c0_13] : memref<1x128xf32, #tpu.memory_space<vmem>>, vector<1x128xf32>
      %14 = vector.broadcast %13 : vector<1x128xf32> to vector<16x128xf32>
      %15 = arith.addf %12, %14 : vector<16x128xf32>
      %c0_14 = arith.constant 0 : index
      %c0_15 = arith.constant 0 : index
      %16 = vector.load %arg6[%c0_14, %c0_15] : memref<16x128xf32, #tpu.memory_space<vmem>>, vector<16x128xf32>
      tpu.vector_store %arg6[%c0_14, %c0_15], %15 {strides = array<i32>} : memref<16x128xf32, #tpu.memory_space<vmem>>, vector<16x128xf32>,
    } else {
    }
    return
  }
  func.func @transform_0(%arg0: i32, %arg1: i32, %arg2: i32) -> (i32, i32) {
    %c0_i32 = arith.constant 0 : i32
    return %arg0, %arg2 : i32, i32
  }
  func.func @transform_1(%arg0: i32, %arg1: i32, %arg2: i32) -> (i32, i32) {
    %c0_i32 = arith.constant 0 : i32
    return %arg2, %arg1 : i32, i32
  }
  func.func @transform_2(%arg0: i32, %arg1: i32, %arg2: i32) -> (i32, i32) {
    %c0_i32 = arith.constant 0 : i32
    %c0_i32_0 = arith.constant 0 : i32
    return %c0_i32, %arg1 : i32, i32
  }
  func.func @transform_3(%arg0: i32, %arg1: i32, %arg2: i32) -> (i32, i32) {
    %c0_i32 = arith.constant 0 : i32
    return %arg0, %arg1 : i32, i32
  }
}

</mosaic_0001>

<llo_original>
// kernel: tpu_custom_call.1
$region0: #{tpu_custom_call.1}
  #allocation0 [shape = 'u32[]', space=smem, size = 0x4, offset = 0x4, fixed_abs, tag = 'smem constant byte address 0x4 - core index']
  #allocation1 [shape = 'u32[72,128]{1,0:T(1,128)}', space=vmem, size = 0x9000, scoped, tag = 'internal scratch']
  #allocation2 [shape = 'f32[16,128]{1,0:T(8,128)}', space=vmem, size = 0x2000, scoped, tag = 'scratch operand']
  %s0 = inlined_call_operand.hbm [shape: bf16[16,32], index: 0, kind: input, shape index: {}]
  %s1 = inlined_call_operand.hbm [shape: bf16[32,128], index: 1, kind: input, shape index: {}]
  %s2 = inlined_call_operand.vmem [shape: f32[1,128], index: 2, kind: input, shape index: {}]
  %s3 = inlined_call_operand.hbm [shape: f32[16,128], index: 3, kind: output, shape index: {}]
  %s4 = sld [smem:[#allocation0]]
  $region38: #{tpu_custom_call.1} parent=0
    _
  %s6 = ssub.s32 1, %s4
  %s7 = scalar_select 0, %s6, %s4
  $region1: #{tpu_custom_call.1} parent=0
    #allocation3 [shape = 'u8[4096]{0}', space=vmem, size = 0x1000, scoped, tag = 'input window, operand 0, single buffered']
    #allocation4 [shape = 's32[1]{0}', space=sflag, size = 0x4, scoped, tag = 'scoped memory for tpu_custom_call.1']
    #allocation5 [shape = 's32[1]{0}', space=sflag, size = 0x4, scoped, tag = 'scoped memory for tpu_custom_call.1']
    #allocation6 [shape = 'u8[8192]{0}', space=vmem, size = 0x2000, scoped, tag = 'input window, operand 1, single buffered']
    #allocation7 [shape = 's32[1]{0}', space=sflag, size = 0x4, scoped, tag = 'scoped memory for tpu_custom_call.1']
    #allocation8 [shape = 'u8[8192]{0}', space=vmem, size = 0x2000, scoped, tag = 'output window, operand 0, single buffered']
    %8 = vsyncpa [#allocation4], 0
    %9 = vsyncpa [#allocation7], 0
    %10 = vsyncpa [#allocation5], 0
    // Predicated region
    $region2: #{tpu_custom_call.1} parent=1 // pred_check
      _
    $region3: #{tpu_custom_call.1} parent=1 // pred_check_branch
      %12 = sbr.rel (0) target = $region5
    $region4: #{tpu_custom_call.1} parent=1 // pred_region
      %14 = vsyncadd [#allocation4], 0
      %s15 = sshll.u32 %s0, 4
      %s16 = int_to_ptr.hbm [resolvable:$true] %s15
      %s17 = sshll.u32 [#allocation3], 4
      %s18 = int_to_ptr.vmem [resolvable:$true] %s17
      %23 = dma.hbm_to_vmem [thread:$0]  %s16, 128, %s18, [#allocation4], 64, 64, 4
    $region5: #{tpu_custom_call.1} parent=1 // pred_fallthru
      _
    // Predicated region
    $region6: #{tpu_custom_call.1} parent=1 // pred_check
      _
    $region7: #{tpu_custom_call.1} parent=1 // pred_check_branch
      %25 = sbr.rel (0) target = $region9
    $region8: #{tpu_custom_call.1} parent=1 // pred_region
      %27 = vsyncadd [#allocation7], 0
      %s28 = sshll.u32 %s1, 4
      %s29 = int_to_ptr.hbm [resolvable:$true] %s28
      %s30 = sshll.u32 [#allocation6], 4
      %s31 = int_to_ptr.vmem [resolvable:$true] %s30
      %36 = dma.hbm_to_vmem [thread:$0]  %s29, 256, %s31, [#allocation7], 64, 64, 4
    $region9: #{tpu_custom_call.1} parent=1 // pred_fallthru
      _
    // Predicated region
    $region10: #{tpu_custom_call.1} parent=1 // pred_check
      _
    $region11: #{tpu_custom_call.1} parent=1 // pred_check_branch
      %38 = sbr.rel (0) target = $region13
    $region12: #{tpu_custom_call.1} parent=1 // pred_region
      _
    $region13: #{tpu_custom_call.1} parent=1 // pred_fallthru
      _
    // Predicated region
    $region14: #{tpu_custom_call.1} parent=1 // pred_check
      _
    $region15: #{tpu_custom_call.1} parent=1 // pred_check_branch
      %40 = sbr.rel (0) target = $region17
    $region16: #{tpu_custom_call.1} parent=1 // pred_region
      %42 = dma.done [#allocation4], 128
    $region17: #{tpu_custom_call.1} parent=1 // pred_fallthru
      _
    // Predicated region
    $region18: #{tpu_custom_call.1} parent=1 // pred_check
      _
    $region19: #{tpu_custom_call.1} parent=1 // pred_check_branch
      %44 = sbr.rel (0) target = $region21
    $region20: #{tpu_custom_call.1} parent=1 // pred_region
      %46 = dma.done [#allocation7], 256
    $region21: #{tpu_custom_call.1} parent=1 // pred_fallthru
      _
    %p48 = scmp.eq.s32.totalorder 0, 0
    // Predicated region
    $region22: #{tpu_custom_call.1} parent=1 // pred_check
      %p49 = pneg %p48
    $region23: #{tpu_custom_call.1} parent=1 // pred_check_branch
      %51 = sbr.rel (%p49) target = $region25
    $region24: #{tpu_custom_call.1} parent=1 // pred_region
      %52 = vst [vmem:[#allocation2] sm:$0xff] 0.0
      %53 = vst [vmem:[#allocation2 + $0x8] sm:$0xff] 0.0
    $region25: #{tpu_custom_call.1} parent=1 // pred_fallthru
      _
    %v54 = vld [vmem:[#allocation2] sm:$0xff]
    %v55 = vld [vmem:[#allocation2 + $0x8] sm:$0xff]
    %v56 = vld [vmem:[#allocation3] sm:$0xf]
    %v57 = vld [vmem:[#allocation3 + $0x4] sm:$0xf]
    %v58 = vld [vmem:[#allocation6] sm:$0xf]
    %v59 = vld [vmem:[#allocation6 + $0x4] sm:$0xf]
    %v60 = vld [vmem:[#allocation6 + $0x8] sm:$0xf]
    %v61 = vld [vmem:[#allocation6 + $0xc] sm:$0xf]
    %v64 = vunpack.c.l.b16 %v56
    %v65 = vunpack.c.l.b16 %v57
    %v66 = vpack.c.b16 %v65, %v64
    %v71 = vunpack.c.l.b16 %v58
    %v72 = vunpack.c.l.b16 %v59
    %v73 = vunpack.c.l.b16 %v60
    %v74 = vunpack.c.l.b16 %v61
    %v75 = vpack.c.b16 %v72, %v71
    %v76 = vpack.c.b16 %v74, %v73
    %vm79 = vcmask 261120
    %v81 = vsel %vm79, %v66, 0
    %83 = vmatpush.bf16.msra.mxu0 0
    %84 = vmatpush.bf16.msra.mxu0 0
    %85 = vmatpush.bf16.msra.mxu0 0
    %86 = vmatpush.bf16.msra.mxu0 0
    %87 = vmatpush.bf16.msra.mxu0 0
    %88 = vmatpush.bf16.msra.mxu0 0
    %89 = vmatpush.bf16.msra.mxu0 %v76
    %90 = vmatpush.bf16.msra.mxu0 %v75
    %91 = vmatmul.bf16.gmra.mxu0 %v81
    %v92 = vpop.f32.mrf.mxu0
    %v93 = vadd.f32 0.0, %v92
    %v94 = vpop.f32.mrf.mxu0
    %v95 = vadd.f32 0.0, %v94
    %96 = vdwg.mxu0
    %v97 = vadd.f32 %v54, %v93
    %v98 = vadd.f32 %v55, %v95
    %99 = vst [vmem:[#allocation2] sm:$0xff] %v97
    %100 = vst [vmem:[#allocation2 + $0x8] sm:$0xff] %v98
    // Predicated region
    $region26: #{tpu_custom_call.1} parent=1 // pred_check
      %p101 = pneg %p48
    $region27: #{tpu_custom_call.1} parent=1 // pred_check_branch
      %103 = sbr.rel (%p101) target = $region29
    $region28: #{tpu_custom_call.1} parent=1 // pred_region
      %v104 = vld [vmem:[#allocation2] sm:$0xff]
      %v105 = vld [vmem:[#allocation2 + $0x8] sm:$0xff]
      %v106 = vld [vmem:[%s2] sm:$0x1]
      %v108 = vperm.slane %v106, 0
      %v110 = vadd.f32 %v104, %v108
      %v111 = vadd.f32 %v105, %v108
      %112 = vst [vmem:[#allocation8] sm:$0xff] %v110
      %113 = vst [vmem:[#allocation8 + $0x8] sm:$0xff] %v111
    $region29: #{tpu_custom_call.1} parent=1 // pred_fallthru
      _
    // Predicated region
    $region30: #{tpu_custom_call.1} parent=1 // pred_check
      _
    $region31: #{tpu_custom_call.1} parent=1 // pred_check_branch
      %115 = sbr.rel (0) target = $region33
    $region32: #{tpu_custom_call.1} parent=1 // pred_region
      %117 = vsyncadd [#allocation5], 0
      %s118 = sshll.u32 [#allocation8], 4
      %s119 = int_to_ptr.vmem [resolvable:$true] %s118
      %s120 = sshll.u32 %s3, 4
      %s121 = int_to_ptr.hbm [resolvable:$true] %s120
      %126 = dma.vmem_to_hbm [thread:$0]  %s119, 256, %s121, [#allocation5], 128, 128, 8
    $region33: #{tpu_custom_call.1} parent=1 // pred_fallthru
      _
    // Predicated region
    $region34: #{tpu_custom_call.1} parent=1 // pred_check
      _
    $region35: #{tpu_custom_call.1} parent=1 // pred_check_branch
      %128 = sbr.rel (0) target = $region37
    $region36: #{tpu_custom_call.1} parent=1 // pred_region
      %130 = dma.done [#allocation5], 256
    $region37: #{tpu_custom_call.1} parent=1 // pred_fallthru
      _
    %131 = vsyncpa [#allocation4], 1
    %132 = vsyncpa [#allocation7], 1
    %133 = vsyncpa [#allocation5], 1

// kernel: tpu_custom_call.1
$region0: #{tpu_custom_call.1}
  #allocation0 [shape = 'u32[]', space=smem, size = 0x4, offset = 0x4, fixed_abs, tag = 'smem constant byte address 0x4 - core index']
  #allocation1 [shape = 'u32[72,128]{1,0:T(1,128)}', space=vmem, size = 0x9000, scoped, tag = 'internal scratch']
  #allocation2 [shape = 'f32[16,128]{1,0:T(8,128)}', space=vmem, size = 0x2000, scoped, tag = 'scratch operand']
  %s0 = inlined_call_operand.hbm [shape: bf16[16,32], index: 0, kind: input, shape index: {}]
  %s1 = inlined_call_operand.hbm [shape: bf16[32,128], index: 1, kind: input, shape index: {}]
  %s2 = inlined_call_operand.vmem [shape: f32[1,128], index: 2, kind: input, shape index: {}]
  %s3 = inlined_call_operand.hbm [shape: f32[16,128], index: 3, kind: output, shape index: {}]
  %s4 = sld [smem:[#allocation0]]
  $region38: #{tpu_custom_call.1} parent=0
    _
  %s6 = ssub.s32 1, %s4
  %s7 = scalar_select 0, %s6, %s4
  $region1: #{tpu_custom_call.1} parent=0
    #allocation3 [shape = 'u8[4096]{0}', space=vmem, size = 0x1000, scoped, tag = 'input window, operand 0, single buffered']
    #allocation4 [shape = 's32[1]{0}', space=sflag, size = 0x4, scoped, tag = 'scoped memory for tpu_custom_call.1']
    #allocation5 [shape = 's32[1]{0}', space=sflag, size = 0x4, scoped, tag = 'scoped memory for tpu_custom_call.1']
    #allocation6 [shape = 'u8[8192]{0}', space=vmem, size = 0x2000, scoped, tag = 'input window, operand 1, single buffered']
    #allocation7 [shape = 's32[1]{0}', space=sflag, size = 0x4, scoped, tag = 'scoped memory for tpu_custom_call.1']
    #allocation8 [shape = 'u8[8192]{0}', space=vmem, size = 0x2000, scoped, tag = 'output window, operand 0, single buffered']
    %8 = vsyncpa [#allocation4], 0
    %9 = vsyncpa [#allocation7], 0
    %10 = vsyncpa [#allocation5], 0
    // Predicated region
    $region2: #{tpu_custom_call.1} parent=1 // pred_check
      _
    $region3: #{tpu_custom_call.1} parent=1 // pred_check_branch
      %12 = sbr.rel (0) target = $region5
    $region4: #{tpu_custom_call.1} parent=1 // pred_region
      %14 = vsyncadd [#allocation4], 0
      %s15 = sshll.u32 %s0, 4
      %s16 = int_to_ptr.hbm [resolvable:$true] %s15
      %s17 = sshll.u32 [#allocation3], 4
      %s18 = int_to_ptr.vmem [resolvable:$true] %s17
      %23 = dma.hbm_to_vmem [thread:$0]  %s16, 128, %s18, [#allocation4], 64, 64, 4
    $region5: #{tpu_custom_call.1} parent=1 // pred_fallthru
      _
    // Predicated region
    $region6: #{tpu_custom_call.1} parent=1 // pred_check
      _
    $region7: #{tpu_custom_call.1} parent=1 // pred_check_branch
      %25 = sbr.rel (0) target = $region9
    $region8: #{tpu_custom_call.1} parent=1 // pred_region
      %27 = vsyncadd [#allocation7], 0
      %s28 = sshll.u32 %s1, 4
      %s29 = int_to_ptr.hbm [resolvable:$true] %s28
      %s30 = sshll.u32 [#allocation6], 4
      %s31 = int_to_ptr.vmem [resolvable:$true] %s30
      %36 = dma.hbm_to_vmem [thread:$0]  %s29, 256, %s31, [#allocation7], 64, 64, 4
    $region9: #{tpu_custom_call.1} parent=1 // pred_fallthru
      _
    // Predicated region
    $region10: #{tpu_custom_call.1} parent=1 // pred_check
      _
    $region11: #{tpu_custom_call.1} parent=1 // pred_check_branch
      %38 = sbr.rel (0) target = $region13
    $region12: #{tpu_custom_call.1} parent=1 // pred_region
      _
    $region13: #{tpu_custom_call.1} parent=1 // pred_fallthru
      _
    // Predicated region
    $region14: #{tpu_custom_call.1} parent=1 // pred_check
      _
    $region15: #{tpu_custom_call.1} parent=1 // pred_check_branch
      %40 = sbr.rel (0) target = $region17
    $region16: #{tpu_custom_call.1} parent=1 // pred_region
      %42 = dma.done [#allocation4], 128
    $region17: #{tpu_custom_call.1} parent=1 // pred_fallthru
      _
    // Predicated region
    $region18: #{tpu_custom_call.1} parent=1 // pred_check
      _
    $region19: #{tpu_custom_call.1} parent=1 // pred_check_branch
      %44 = sbr.rel (0) target = $region21
    $region20: #{tpu_custom_call.1} parent=1 // pred_region
      %46 = dma.done [#allocation7], 256
    $region21: #{tpu_custom_call.1} parent=1 // pred_fallthru
      _
    %p48 = scmp.eq.s32.totalorder 0, 0
    // Predicated region
    $region22: #{tpu_custom_call.1} parent=1 // pred_check
      %p49 = pneg %p48
    $region23: #{tpu_custom_call.1} parent=1 // pred_check_branch
      %51 = sbr.rel (%p49) target = $region25
    $region24: #{tpu_custom_call.1} parent=1 // pred_region
      %52 = vst [vmem:[#allocation2] sm:$0xff] 0.0
      %53 = vst [vmem:[#allocation2 + $0x8] sm:$0xff] 0.0
    $region25: #{tpu_custom_call.1} parent=1 // pred_fallthru
      _
    %v54 = vld [vmem:[#allocation2] sm:$0xff]
    %v55 = vld [vmem:[#allocation2 + $0x8] sm:$0xff]
    %v56 = vld [vmem:[#allocation3] sm:$0xf]
    %v57 = vld [vmem:[#allocation3 + $0x4] sm:$0xf]
    %v58 = vld [vmem:[#allocation6] sm:$0xf]
    %v59 = vld [vmem:[#allocation6 + $0x4] sm:$0xf]
    %v60 = vld [vmem:[#allocation6 + $0x8] sm:$0xf]
    %v61 = vld [vmem:[#allocation6 + $0xc] sm:$0xf]
    %v64 = vunpack.c.l.b16 %v56
    %v65 = vunpack.c.l.b16 %v57
    %v66 = vpack.c.b16 %v65, %v64
    %v71 = vunpack.c.l.b16 %v58
    %v72 = vunpack.c.l.b16 %v59
    %v73 = vunpack.c.l.b16 %v60
    %v74 = vunpack.c.l.b16 %v61
    %v75 = vpack.c.b16 %v72, %v71
    %v76 = vpack.c.b16 %v74, %v73
    %vm79 = vcmask 261120
    %v81 = vsel %vm79, %v66, 0
    %83 = vmatpush.bf16.msra.mxu0 0
    %84 = vmatpush.bf16.msra.mxu0 0
    %85 = vmatpush.bf16.msra.mxu0 0
    %86 = vmatpush.bf16.msra.mxu0 0
    %87 = vmatpush.bf16.msra.mxu0 0
    %88 = vmatpush.bf16.msra.mxu0 0
    %89 = vmatpush.bf16.msra.mxu0 %v76
    %90 = vmatpush.bf16.msra.mxu0 %v75
    %91 = vmatmul.bf16.gmra.mxu0 %v81
    %v92 = vpop.f32.mrf.mxu0
    %v93 = vadd.f32 0.0, %v92
    %v94 = vpop.f32.mrf.mxu0
    %v95 = vadd.f32 0.0, %v94
    %96 = vdwg.mxu0
    %v97 = vadd.f32 %v54, %v93
    %v98 = vadd.f32 %v55, %v95
    %99 = vst [vmem:[#allocation2] sm:$0xff] %v97
    %100 = vst [vmem:[#allocation2 + $0x8] sm:$0xff] %v98
    // Predicated region
    $region26: #{tpu_custom_call.1} parent=1 // pred_check
      %p101 = pneg %p48
    $region27: #{tpu_custom_call.1} parent=1 // pred_check_branch
      %103 = sbr.rel (%p101) target = $region29
    $region28: #{tpu_custom_call.1} parent=1 // pred_region
      %v104 = vld [vmem:[#allocation2] sm:$0xff]
      %v105 = vld [vmem:[#allocation2 + $0x8] sm:$0xff]
      %v106 = vld [vmem:[%s2] sm:$0x1]
      %v108 = vperm.slane %v106, 0
      %v110 = vadd.f32 %v104, %v108
      %v111 = vadd.f32 %v105, %v108
      %112 = vst [vmem:[#allocation8] sm:$0xff] %v110
      %113 = vst [vmem:[#allocation8 + $0x8] sm:$0xff] %v111
    $region29: #{tpu_custom_call.1} parent=1 // pred_fallthru
      _
    // Predicated region
    $region30: #{tpu_custom_call.1} parent=1 // pred_check
      _
    $region31: #{tpu_custom_call.1} parent=1 // pred_check_branch
      %115 = sbr.rel (0) target = $region33
    $region32: #{tpu_custom_call.1} parent=1 // pred_region
      %117 = vsyncadd [#allocation5], 0
      %s118 = sshll.u32 [#allocation8], 4
      %s119 = int_to_ptr.vmem [resolvable:$true] %s118
      %s120 = sshll.u32 %s3, 4
      %s121 = int_to_ptr.hbm [resolvable:$true] %s120
      %126 = dma.vmem_to_hbm [thread:$0]  %s119, 256, %s121, [#allocation5], 128, 128, 8
    $region33: #{tpu_custom_call.1} parent=1 // pred_fallthru
      _
    // Predicated region
    $region34: #{tpu_custom_call.1} parent=1 // pred_check
      _
    $region35: #{tpu_custom_call.1} parent=1 // pred_check_branch
      %128 = sbr.rel (0) target = $region37
    $region36: #{tpu_custom_call.1} parent=1 // pred_region
      %130 = dma.done [#allocation5], 256
    $region37: #{tpu_custom_call.1} parent=1 // pred_fallthru
      _
    %131 = vsyncpa [#allocation4], 1
    %132 = vsyncpa [#allocation7], 1
    %133 = vsyncpa [#allocation5], 1

</llo_original>
